<compile_context>
chip_gen: v5e
topology: v5e:2x2
jax: 0.10.0
libtpu: 0.0.40
codegen_flags: <defaults>
</compile_context>

<pallas_src>
import functools
import math

import jax
import jax.numpy as jnp
import numpy as np
from jax.experimental import pallas as pl
from jax.experimental.pallas import tpu as pltpu

# ---------------- problem sizes (small, lane-aligned) ----------------
SEQ = 8          # x.size(0)
BATCH = 4        # batch
D_MODEL = 128    # d_model (lane-dense: multiple of 128)
MAX_LEN = 1000   # PositionalEncoding default max_len


# ---------------- buffer construction (mirrors the module __init__) ----------------
def make_positional_encoding(d_model, max_len=MAX_LEN, dtype=jnp.float32):
    # d_model must be even (same latent assumption as the PyTorch module).
    position = jnp.arange(max_len, dtype=jnp.float32)[:, None]                      # (max_len, 1)
    div_term = jnp.exp(jnp.arange(0, d_model, 2, dtype=jnp.float32)
                       * (-math.log(10000.0) / d_model))                            # (d_model/2,)
    angles = position * div_term                                                     # (max_len, d_model/2)
    pe = jnp.zeros((max_len, d_model), jnp.float32)
    pe = pe.at[:, 0::2].set(jnp.sin(angles))
    pe = pe.at[:, 1::2].set(jnp.cos(angles))
    # The module stores (max_len, 1, d_model); we keep the equivalent lane-dense 2-D layout.
    return pe.astype(dtype)


# ---------------- kernel ----------------
def pos_enc_kernel(x_ref, pe_ref, o_ref, *, batch):
    # x_ref / o_ref: (s_blk * batch, D)  -- sublane-dense rows of the flattened (S, B, D) input.
    # pe_ref:        (s_blk, D)          -- one full (8,128) vreg tile per 8 pe rows.
    # Repeat each pe row `batch` times (sublane/XLU work) so it lines up with the
    # flattened row order [s0b0, s0b1, ..., s0b{B-1}, s1b0, ...].
    pe_rep = jnp.repeat(pe_ref[...], batch, axis=0)
    o_ref[...] = x_ref[...] + pe_rep


# ---------------- wrapper ----------------
def positional_encoding_forward(x, pe_buffer, *, s_block=None):
    """x: (seq, batch, d_model); pe_buffer: (max_len, d_model) or (max_len, 1, d_model)."""
    S, B, D = x.shape
    max_len = pe_buffer.shape[0]
    assert S <= max_len

    # Narrow dtype for the table (halves pe HBM bytes when the model runs bf16; v5e win).
    pe2d = pe_buffer.reshape(max_len, D).astype(x.dtype)

    # Collapse (S, B, D) -> (S*B, D): free reshape of contiguous data; makes x/out blocks
    # sublane-dense instead of a (B=4, 128) half-empty tile per seq row.
    x2d = x.reshape(S * B, D)

    # Biggest-block-that-fits default (single grid step at small S).  For production seq
    # lengths pick s_block so the grid has an even number of "parallel" steps on v7x and
    # each double-buffered in+out block stays within the scoped-VMEM budget (smaller on v7x).
    s_block = S if s_block is None else s_block
    assert S % s_block == 0
    rows = s_block * B
    assert rows % 8 == 0 or rows == S * B, "x/out block rows should be sublane-aligned"
    grid = (S // s_block,)

    itemsize = jnp.dtype(x.dtype).itemsize
    bytes_accessed = (2 * S * B * D + S * D) * itemsize  # x read + out write + pe rows read

    out2d = pl.pallas_call(
        functools.partial(pos_enc_kernel, batch=B),
        grid=grid,
        in_specs=[
            pl.BlockSpec((rows, D), lambda i: (i, 0)),      # x rows for this seq block
            pl.BlockSpec((s_block, D), lambda i: (i, 0)),   # pe rows i*s_block:(i+1)*s_block
        ],
        out_specs=pl.BlockSpec((rows, D), lambda i: (i, 0)),
        out_shape=jax.ShapeDtypeStruct((S * B, D), x.dtype),
        compiler_params=pltpu.CompilerParams(dimension_semantics=("parallel",)),
        cost_estimate=pl.CostEstimate(flops=S * B * D, transcendentals=0,
                                      bytes_accessed=bytes_accessed),
        # NOTE: if x is dead after this op and donated at the jit boundary, adding
        # input_output_aliases={0: 0} saves the output HBM allocation.
    )(x2d, pe2d)
    return out2d.reshape(S, B, D)


# ---------------- pure-JAX reference ----------------
def reference_forward(x, pe2d):
    S = x.shape[0]
    return x + pe2d[:S][:, None, :]      # same broadcast as the PyTorch forward


if __name__ == "__main__":
    key = jax.random.PRNGKey(0)
    x = jax.random.normal(key, (SEQ, BATCH, D_MODEL), jnp.float32)   # (seq, batch, d_model)
    pe_buffer = make_positional_encoding(D_MODEL, MAX_LEN)           # (max_len, d_model)

    out = positional_encoding_forward(x, pe_buffer)
    out = jax.block_until_ready(out)

    ref = reference_forward(x, pe_buffer)
    np.testing.assert_allclose(np.asarray(out), np.asarray(ref), rtol=1e-6, atol=1e-6)
    assert out.shape == (SEQ, BATCH, D_MODEL)

    print("KERNEL_OK")
</pallas_src>

<mosaic_0001>
module attributes {stable_mosaic.version = 11 : i64} {
  func.func @pos_enc_kernel(%arg0: i32, %arg1: memref<32x128xf32, #tpu.memory_space<vmem>>, %arg2: memref<8x128xf32, #tpu.memory_space<vmem>>, %arg3: memref<32x128xf32, #tpu.memory_space<vmem>>) attributes {dimension_semantics = [#tpu.dimension_semantics<parallel>], iteration_bounds = array<i64: 1>, scalar_prefetch = 0 : i64, scratch_operands = 0 : i64, tpu.core_type = #tpu.core_type<tc>, window_params = [{transform_indices = @transform_0, window_bounds = array<i64: 32, 128>}, {transform_indices = @transform_1, window_bounds = array<i64: 8, 128>}, {transform_indices = @transform_2, window_bounds = array<i64: 32, 128>}]} {
    %c0 = arith.constant 0 : index
    %c0_0 = arith.constant 0 : index
    %0 = vector.load %arg2[%c0, %c0_0] : memref<8x128xf32, #tpu.memory_space<vmem>>, vector<8x128xf32>
    %1 = vector.shape_cast %0 : vector<8x128xf32> to vector<8x1x128xf32>
    %2 = vector.broadcast %1 : vector<8x1x128xf32> to vector<8x4x128xf32>
    %3 = vector.shape_cast %2 : vector<8x4x128xf32> to vector<32x128xf32>
    %c0_1 = arith.constant 0 : index
    %c0_2 = arith.constant 0 : index
    %4 = vector.load %arg1[%c0_1, %c0_2] : memref<32x128xf32, #tpu.memory_space<vmem>>, vector<32x128xf32>
    %5 = arith.addf %4, %3 : vector<32x128xf32>
    %c0_3 = arith.constant 0 : index
    %c0_4 = arith.constant 0 : index
    %6 = vector.load %arg3[%c0_3, %c0_4] : memref<32x128xf32, #tpu.memory_space<vmem>>, vector<32x128xf32>
    tpu.vector_store %arg3[%c0_3, %c0_4], %5 {strides = array<i32>} : memref<32x128xf32, #tpu.memory_space<vmem>>, vector<32x128xf32>,
    return
  }
  func.func @transform_0(%arg0: i32) -> (i32, i32) {
    %c0_i32 = arith.constant 0 : i32
    %c0_i32_0 = arith.constant 0 : i32
    return %arg0, %c0_i32 : i32, i32
  }
  func.func @transform_1(%arg0: i32) -> (i32, i32) {
    %c0_i32 = arith.constant 0 : i32
    %c0_i32_0 = arith.constant 0 : i32
    return %arg0, %c0_i32 : i32, i32
  }
  func.func @transform_2(%arg0: i32) -> (i32, i32) {
    %c0_i32 = arith.constant 0 : i32
    %c0_i32_0 = arith.constant 0 : i32
    return %arg0, %c0_i32 : i32, i32
  }
}

</mosaic_0001>

<llo_original>
// kernel: tpu_custom_call.1
$region0: #{tpu_custom_call.1}
  #allocation0 [shape = 'u32[]', space=smem, size = 0x4, offset = 0x4, fixed_abs, tag = 'smem constant byte address 0x4 - core index']
  #allocation1 [shape = 'u32[72,128]{1,0:T(1,128)}', space=vmem, size = 0x9000, scoped, tag = 'internal scratch']
  %s0 = inlined_call_operand.hbm [shape: f32[32,128], index: 0, kind: input, shape index: {}]
  %s1 = inlined_call_operand.hbm [shape: f32[1000,128], index: 1, kind: input, shape index: {}]
  %s2 = inlined_call_operand.hbm [shape: f32[32,128], index: 2, kind: output, shape index: {}]
  %s3 = sld [smem:[#allocation0]]
  $region26: #{tpu_custom_call.1} parent=0
    _
  %s5 = ssub.s32 1, %s3
  %s6 = scalar_select 0, %s5, %s3
  $region1: #{tpu_custom_call.1} parent=0
    #allocation2 [shape = 'u8[16384]{0}', space=vmem, size = 0x4000, scoped, tag = 'input window, operand 0, single buffered']
    #allocation3 [shape = 's32[1]{0}', space=sflag, size = 0x4, scoped, tag = 'scoped memory for tpu_custom_call.1']
    #allocation4 [shape = 's32[1]{0}', space=sflag, size = 0x4, scoped, tag = 'scoped memory for tpu_custom_call.1']
    #allocation5 [shape = 'u8[4096]{0}', space=vmem, size = 0x1000, scoped, tag = 'input window, operand 1, single buffered']
    #allocation6 [shape = 's32[1]{0}', space=sflag, size = 0x4, scoped, tag = 'scoped memory for tpu_custom_call.1']
    #allocation7 [shape = 'u8[16384]{0}', space=vmem, size = 0x4000, scoped, tag = 'output window, operand 0, single buffered']
    %7 = vsyncpa [#allocation3], 0
    %8 = vsyncpa [#allocation6], 0
    %9 = vsyncpa [#allocation4], 0
    // Predicated region
    $region2: #{tpu_custom_call.1} parent=1 // pred_check
      _
    $region3: #{tpu_custom_call.1} parent=1 // pred_check_branch
      %11 = sbr.rel (0) target = $region5
    $region4: #{tpu_custom_call.1} parent=1 // pred_region
      %13 = vsyncadd [#allocation3], 0
      %s14 = sshll.u32 %s0, 4
      %s15 = int_to_ptr.hbm [resolvable:$true] %s14
      %s16 = sshll.u32 [#allocation2], 4
      %s17 = int_to_ptr.vmem [resolvable:$true] %s16
      %22 = dma.hbm_to_vmem [thread:$0]  %s15, 512, %s17, [#allocation3], 128, 128, 8
    $region5: #{tpu_custom_call.1} parent=1 // pred_fallthru
      _
    // Predicated region
    $region6: #{tpu_custom_call.1} parent=1 // pred_check
      _
    $region7: #{tpu_custom_call.1} parent=1 // pred_check_branch
      %24 = sbr.rel (0) target = $region9
    $region8: #{tpu_custom_call.1} parent=1 // pred_region
      %26 = vsyncadd [#allocation6], 0
      %s28 = sshll.u32 %s1, 4
      %s29 = int_to_ptr.hbm [resolvable:$true] %s28
      %s30 = sshll.u32 [#allocation5], 4
      %s31 = int_to_ptr.vmem [resolvable:$true] %s30
      %33 = dma.hbm_to_vmem [thread:$0]  %s29, 128, %s31, [#allocation6]
    $region9: #{tpu_custom_call.1} parent=1 // pred_fallthru
      _
    // Predicated region
    $region10: #{tpu_custom_call.1} parent=1 // pred_check
      _
    $region11: #{tpu_custom_call.1} parent=1 // pred_check_branch
      %35 = sbr.rel (0) target = $region13
    $region12: #{tpu_custom_call.1} parent=1 // pred_region
      %37 = dma.done [#allocation3], 512
    $region13: #{tpu_custom_call.1} parent=1 // pred_fallthru
      _
    // Predicated region
    $region14: #{tpu_custom_call.1} parent=1 // pred_check
      _
    $region15: #{tpu_custom_call.1} parent=1 // pred_check_branch
      %39 = sbr.rel (0) target = $region17
    $region16: #{tpu_custom_call.1} parent=1 // pred_region
      %41 = dma.done [#allocation6], 128
    $region17: #{tpu_custom_call.1} parent=1 // pred_fallthru
      _
    %v42 = vld [vmem:[#allocation5] sm:$0xff]
    %v44 = vrot.slane %v42, 1
    %v45 = vrot.slane %v42, 2
    %v46 = vrot.slane %v42, 3
    %v47 = vrot.slane %v42, 4
    %v48 = vrot.slane %v42, 5
    %v49 = vrot.slane %v42, 6
    %v50 = vrot.slane %v42, 7
    %v51 = vperm.slane %v42, 0
    %v52 = vperm.slane %v44, 0
    %v53 = vperm.slane %v45, 0
    %v54 = vperm.slane %v46, 0
    %v55 = vperm.slane %v47, 0
    %v56 = vperm.slane %v48, 0
    %v57 = vperm.slane %v49, 0
    %v58 = vperm.slane %v50, 0
    %v59 = vld [vmem:[#allocation2] sm:$0xff]
    %v60 = vld [vmem:[#allocation2 + $0x8] sm:$0xff]
    %v61 = vld [vmem:[#allocation2 + $0x10] sm:$0xff]
    %v62 = vld [vmem:[#allocation2 + $0x18] sm:$0xff]
    %63 = vst [vmem:[#allocation1] ss:$2 sm:$0xff] %v51
    %s64 = scalar_lea.vmem [#allocation1], 1
    %65 = vst [vmem:[%s64] ss:$2 sm:$0xff] %v52
    %s66 = scalar_lea.vmem [#allocation1], 16
    %67 = vst [vmem:[%s66] ss:$2 sm:$0xff] %v53
    %s68 = scalar_lea.vmem [#allocation1], 17
    %69 = vst [vmem:[%s68] ss:$2 sm:$0xff] %v54
    %s70 = scalar_lea.vmem [#allocation1], 32
    %71 = vst [vmem:[%s70] ss:$2 sm:$0xff] %v55
    %s72 = scalar_lea.vmem [#allocation1], 33
    %73 = vst [vmem:[%s72] ss:$2 sm:$0xff] %v56
    %s74 = scalar_lea.vmem [#allocation1], 48
    %75 = vst [vmem:[%s74] ss:$2 sm:$0xff] %v57
    %s76 = scalar_lea.vmem [#allocation1], 49
    %77 = vst [vmem:[%s76] ss:$2 sm:$0xff] %v58
    %v78 = vld.sshfl [vmem:[#allocation1] sm:$0xff pattern:$0x75316420]
    %v79 = vld.sshfl [vmem:[#allocation1 + $0x10] sm:$0xff pattern:$0x75316420]
    %v80 = vld.sshfl [vmem:[#allocation1 + $0x20] sm:$0xff pattern:$0x75316420]
    %v81 = vld.sshfl [vmem:[#allocation1 + $0x30] sm:$0xff pattern:$0x75316420]
    %v86 = vadd.f32 %v59, %v78
    %v87 = vadd.f32 %v60, %v79
    %v88 = vadd.f32 %v61, %v80
    %v89 = vadd.f32 %v62, %v81
    %90 = vst [vmem:[#allocation7] sm:$0xff] %v86
    %91 = vst [vmem:[#allocation7 + $0x8] sm:$0xff] %v87
    %92 = vst [vmem:[#allocation7 + $0x10] sm:$0xff] %v88
    %93 = vst [vmem:[#allocation7 + $0x18] sm:$0xff] %v89
    // Predicated region
    $region18: #{tpu_custom_call.1} parent=1 // pred_check
      _
    $region19: #{tpu_custom_call.1} parent=1 // pred_check_branch
      %95 = sbr.rel (0) target = $region21
    $region20: #{tpu_custom_call.1} parent=1 // pred_region
      %97 = vsyncadd [#allocation4], 0
      %s98 = sshll.u32 [#allocation7], 4
      %s99 = int_to_ptr.vmem [resolvable:$true] %s98
      %s100 = sshll.u32 %s2, 4
      %s101 = int_to_ptr.hbm [resolvable:$true] %s100
      %106 = dma.vmem_to_hbm [thread:$0]  %s99, 512, %s101, [#allocation4], 128, 128, 8
    $region21: #{tpu_custom_call.1} parent=1 // pred_fallthru
      _
    // Predicated region
    $region22: #{tpu_custom_call.1} parent=1 // pred_check
      _
    $region23: #{tpu_custom_call.1} parent=1 // pred_check_branch
      %108 = sbr.rel (0) target = $region25
    $region24: #{tpu_custom_call.1} parent=1 // pred_region
      %110 = dma.done [#allocation4], 512
    $region25: #{tpu_custom_call.1} parent=1 // pred_fallthru
      _
    %111 = vsyncpa [#allocation3], 1
    %112 = vsyncpa [#allocation6], 1
    %113 = vsyncpa [#allocation4], 1

</llo_original>
